<compile_context>
chip_gen: v7x
topology: tpu7x:2x2x1
jax: 0.10.0
libtpu: 0.0.40
codegen_flags: <defaults>
</compile_context>

<pallas_src>
import jax
import jax.numpy as jnp
from jax.experimental import pallas as pl
from jax.experimental.pallas import tpu as pltpu


def mlp_kernel(x_ref, w1_ref, b1_ref, w2_ref, b2_ref, w3_ref, b3_ref, o_ref):
    # Fused 3-layer MLP on one batch tile; all weights/biases (~13 KB) stay VMEM-resident.
    x = x_ref[...]
    h1 = jnp.dot(x, w1_ref[...], preferred_element_type=jnp.float32) + b1_ref[...]
    h1 = jnp.maximum(h1, 0.0).astype(w2_ref.dtype)   # no-op in f32; halves MXU push in bf16
    h2 = jnp.dot(h1, w2_ref[...], preferred_element_type=jnp.float32) + b2_ref[...]
    h2 = jnp.maximum(h2, 0.0).astype(w3_ref.dtype)
    o_ref[...] = (
        jnp.dot(h2, w3_ref[...], preferred_element_type=jnp.float32) + b3_ref[...]
    ).astype(o_ref.dtype)


def _round_up(n, m):
    return ((n + m - 1) // m) * m


def _pick_batch_tile(B, *, sublane=8, preferred=8192):
    """Pick the streaming batch tile.

    Small batches (<= preferred): one tile, rows rounded up to a sublane
    multiple (partial block is handled by Pallas write-masking).
    Large batches: prefer an exact divisor of B near `preferred` (no partial
    tail block); otherwise fall back to `preferred`.  B > preferred always
    gives >= 2 grid steps, so the "parallel" axis can shard across both
    TensorCores on v7x.
    """
    if B <= preferred:
        return max(sublane, _round_up(B, sublane))
    top = (preferred // sublane) * sublane
    # Search downward (within 2x of target) for a sublane-aligned exact divisor of B.
    for cand in range(top, max(sublane, top // 2) - 1, -sublane):
        if B % cand == 0:
            return cand
    return top


def neural_net_forward(x, params, *, batch_tile=None, use_bf16_inputs=False):
    """x: (B, 64) float32.  params: dict of (w1,b1,w2,b2,w3,b3), wk stored as (in, out)."""
    B, D_in = x.shape
    assert D_in == 64

    w1, b1 = params["w1"], params["b1"]
    w2, b2 = params["w2"], params["b2"]
    w3, b3 = params["w3"], params["b3"]
    D_out = w3.shape[1]

    if use_bf16_inputs:
        # Halves the dominant HBM read (x is ~85% of traffic); MXU still accumulates f32.
        x = x.astype(jnp.bfloat16)
        w1, w2, w3 = (w.astype(jnp.bfloat16) for w in (w1, w2, w3))

    if batch_tile is None:
        sublane = 16 if x.dtype == jnp.bfloat16 else 8
        batch_tile = _pick_batch_tile(B, sublane=sublane)

    # No padding: Pallas masks the out-of-bounds writes of a partial last block,
    # and rows are independent, so junk tail-row reads never reach the output.
    grid = (pl.cdiv(B, batch_tile),)

    def full(shape):
        # weights/biases: same full block every grid step (not re-DMA'd after step 0)
        return pl.BlockSpec(shape, lambda i: (0, 0))

    itemsize = jnp.dtype(x.dtype).itemsize
    cost = pl.CostEstimate(
        flops=2 * B * (64 * 32 + 32 * 16 + 16 * 10),
        transcendentals=0,
        bytes_accessed=B * (64 * itemsize + D_out * 4)
        + sum(int(a.size) * jnp.dtype(a.dtype).itemsize for a in (w1, b1, w2, b2, w3, b3)),
    )

    return pl.pallas_call(
        mlp_kernel,
        out_shape=jax.ShapeDtypeStruct((B, D_out), jnp.float32),
        grid_spec=pltpu.PrefetchScalarGridSpec(
            num_scalar_prefetch=0,
            grid=grid,
            in_specs=[
                pl.BlockSpec((batch_tile, D_in), lambda i: (i, 0)),  # x tile (streamed)
                full(w1.shape), full(b1.shape),
                full(w2.shape), full(b2.shape),
                full(w3.shape), full(b3.shape),
            ],
            out_specs=pl.BlockSpec((batch_tile, D_out), lambda i: (i, 0)),
        ),
        compiler_params=pltpu.CompilerParams(
            dimension_semantics=("parallel",),       # shards batch tiles across TCs on v7x
            vmem_limit_bytes=32 * 1024 * 1024,       # headroom for 8192-row double-buffered tiles
        ),
        cost_estimate=cost,
    )(x, w1, b1, w2, b2, w3, b3)


def init_params(key):
    """Deterministic init mimicking nn.Linear's uniform(-1/sqrt(fan_in), 1/sqrt(fan_in))."""
    dims = [(64, 32), (32, 16), (16, 10)]
    params = {}
    for idx, (fan_in, fan_out) in enumerate(dims, start=1):
        key, kw, kb = jax.random.split(key, 3)
        bound = 1.0 / jnp.sqrt(float(fan_in))
        # stored as (in, out) = W.T relative to PyTorch's (out, in)
        params[f"w{idx}"] = jax.random.uniform(
            kw, (fan_in, fan_out), jnp.float32, minval=-bound, maxval=bound)
        params[f"b{idx}"] = jax.random.uniform(
            kb, (1, fan_out), jnp.float32, minval=-bound, maxval=bound)
    return params


def reference_forward(x, params):
    h1 = jnp.maximum(x @ params["w1"] + params["b1"], 0.0)
    h2 = jnp.maximum(h1 @ params["w2"] + params["b2"], 0.0)
    return h2 @ params["w3"] + params["b3"]


if __name__ == "__main__":
    key = jax.random.PRNGKey(0)
    key, kx = jax.random.split(key)
    params = init_params(key)

    # Small batch (single tile) and a non-divisible batch (exercises the masked
    # partial-block path that replaced the jnp.pad round trip).
    for B in (8, 300):
        x = jax.random.normal(jax.random.fold_in(kx, B), (B, 64), jnp.float32)
        ref = reference_forward(x, params)

        # Default f32 path: tight tolerance.
        out = jax.block_until_ready(neural_net_forward(x, params))
        assert out.shape == (B, 10)
        assert jnp.allclose(out, ref, atol=1e-5, rtol=1e-5), f"f32 mismatch at B={B}"

        # bf16 streaming path: halves HBM reads; looser tolerance (f32 accumulation kept).
        out_bf16 = jax.block_until_ready(
            neural_net_forward(x, params, use_bf16_inputs=True))
        assert out_bf16.shape == (B, 10)
        assert jnp.allclose(out_bf16, ref, atol=3e-2, rtol=3e-2), f"bf16 mismatch at B={B}"

    print("KERNEL_OK")
</pallas_src>

<mosaic_0001>
module attributes {stable_mosaic.version = 11 : i64} {
  func.func @mlp_kernel(%arg0: i32, %arg1: memref<8x64xf32, #tpu.memory_space<vmem>>, %arg2: memref<64x32xf32, #tpu.memory_space<vmem>>, %arg3: memref<1x32xf32, #tpu.memory_space<vmem>>, %arg4: memref<32x16xf32, #tpu.memory_space<vmem>>, %arg5: memref<1x16xf32, #tpu.memory_space<vmem>>, %arg6: memref<16x10xf32, #tpu.memory_space<vmem>>, %arg7: memref<1x10xf32, #tpu.memory_space<vmem>>, %arg8: memref<8x10xf32, #tpu.memory_space<vmem>>) attributes {dimension_semantics = [#tpu.dimension_semantics<parallel>], iteration_bounds = array<i64: 1>, scalar_prefetch = 0 : i64, scratch_operands = 0 : i64, tpu.core_type = #tpu.core_type<tc>, window_params = [{transform_indices = @transform_0, window_bounds = array<i64: 8, 64>}, {pipeline_mode = #tpu.pipeline_mode<synchronous>, transform_indices = @transform_1, window_bounds = array<i64: 64, 32>}, {pipeline_mode = #tpu.pipeline_mode<synchronous>, transform_indices = @transform_2, window_bounds = array<i64: 1, 32>}, {pipeline_mode = #tpu.pipeline_mode<synchronous>, transform_indices = @transform_3, window_bounds = array<i64: 32, 16>}, {pipeline_mode = #tpu.pipeline_mode<synchronous>, transform_indices = @transform_4, window_bounds = array<i64: 1, 16>}, {pipeline_mode = #tpu.pipeline_mode<synchronous>, transform_indices = @transform_5, window_bounds = array<i64: 16, 10>}, {pipeline_mode = #tpu.pipeline_mode<synchronous>, transform_indices = @transform_6, window_bounds = array<i64: 1, 10>}, {transform_indices = @transform_7, window_bounds = array<i64: 8, 10>}]} {
    %c0 = arith.constant 0 : index
    %c0_0 = arith.constant 0 : index
    %0 = vector.load %arg1[%c0, %c0_0] : memref<8x64xf32, #tpu.memory_space<vmem>>, vector<8x64xf32>
    %c0_1 = arith.constant 0 : index
    %c0_2 = arith.constant 0 : index
    %1 = vector.load %arg2[%c0_1, %c0_2] : memref<64x32xf32, #tpu.memory_space<vmem>>, vector<64x32xf32>
    %cst = arith.constant dense<0.000000e+00> : vector<8x32xf32>
    %2 = tpu.matmul %0, %1, %cst {dimension_numbers = #tpu.dot_dimension_numbers<[1], [0], [0], [1], [0, 0, 1, 1], [], []>} : vector<8x64xf32>, vector<64x32xf32>, vector<8x32xf32> -> vector<8x32xf32>
    %c0_3 = arith.constant 0 : index
    %c0_4 = arith.constant 0 : index
    %3 = vector.load %arg3[%c0_3, %c0_4] : memref<1x32xf32, #tpu.memory_space<vmem>>, vector<1x32xf32>
    %4 = vector.broadcast %3 : vector<1x32xf32> to vector<8x32xf32>
    %5 = arith.addf %2, %4 : vector<8x32xf32>
    %cst_5 = arith.constant 0.000000e+00 : f32
    %6 = vector.broadcast %cst_5 : f32 to vector<8x32xf32>
    %7 = arith.maximumf %5, %6 : vector<8x32xf32>
    %c0_6 = arith.constant 0 : index
    %c0_7 = arith.constant 0 : index
    %8 = vector.load %arg4[%c0_6, %c0_7] : memref<32x16xf32, #tpu.memory_space<vmem>>, vector<32x16xf32>
    %cst_8 = arith.constant dense<0.000000e+00> : vector<8x16xf32>
    %9 = tpu.matmul %7, %8, %cst_8 {dimension_numbers = #tpu.dot_dimension_numbers<[1], [0], [0], [1], [0, 0, 1, 1], [], []>} : vector<8x32xf32>, vector<32x16xf32>, vector<8x16xf32> -> vector<8x16xf32>
    %c0_9 = arith.constant 0 : index
    %c0_10 = arith.constant 0 : index
    %10 = vector.load %arg5[%c0_9, %c0_10] : memref<1x16xf32, #tpu.memory_space<vmem>>, vector<1x16xf32>
    %11 = vector.broadcast %10 : vector<1x16xf32> to vector<8x16xf32>
    %12 = arith.addf %9, %11 : vector<8x16xf32>
    %cst_11 = arith.constant 0.000000e+00 : f32
    %13 = vector.broadcast %cst_11 : f32 to vector<8x16xf32>
    %14 = arith.maximumf %12, %13 : vector<8x16xf32>
    %c0_12 = arith.constant 0 : index
    %c0_13 = arith.constant 0 : index
    %15 = vector.load %arg6[%c0_12, %c0_13] : memref<16x10xf32, #tpu.memory_space<vmem>>, vector<16x10xf32>
    %cst_14 = arith.constant dense<0.000000e+00> : vector<8x10xf32>
    %16 = tpu.matmul %14, %15, %cst_14 {dimension_numbers = #tpu.dot_dimension_numbers<[1], [0], [0], [1], [0, 0, 1, 1], [], []>} : vector<8x16xf32>, vector<16x10xf32>, vector<8x10xf32> -> vector<8x10xf32>
    %c0_15 = arith.constant 0 : index
    %c0_16 = arith.constant 0 : index
    %17 = vector.load %arg7[%c0_15, %c0_16] : memref<1x10xf32, #tpu.memory_space<vmem>>, vector<1x10xf32>
    %18 = vector.broadcast %17 : vector<1x10xf32> to vector<8x10xf32>
    %19 = arith.addf %16, %18 : vector<8x10xf32>
    %c0_17 = arith.constant 0 : index
    %c0_18 = arith.constant 0 : index
    %20 = vector.load %arg8[%c0_17, %c0_18] : memref<8x10xf32, #tpu.memory_space<vmem>>, vector<8x10xf32>
    tpu.vector_store %arg8[%c0_17, %c0_18], %19 {strides = array<i32>} : memref<8x10xf32, #tpu.memory_space<vmem>>, vector<8x10xf32>,
    return
  }
  func.func @transform_0(%arg0: i32) -> (i32, i32) {
    %c0_i32 = arith.constant 0 : i32
    %c0_i32_0 = arith.constant 0 : i32
    return %arg0, %c0_i32 : i32, i32
  }
  func.func @transform_1(%arg0: i32) -> (i32, i32) {
    %c0_i32 = arith.constant 0 : i32
    %c0_i32_0 = arith.constant 0 : i32
    %c0_i32_1 = arith.constant 0 : i32
    return %c0_i32, %c0_i32_0 : i32, i32
  }
  func.func @transform_2(%arg0: i32) -> (i32, i32) {
    %c0_i32 = arith.constant 0 : i32
    %c0_i32_0 = arith.constant 0 : i32
    %c0_i32_1 = arith.constant 0 : i32
    return %c0_i32, %c0_i32_0 : i32, i32
  }
  func.func @transform_3(%arg0: i32) -> (i32, i32) {
    %c0_i32 = arith.constant 0 : i32
    %c0_i32_0 = arith.constant 0 : i32
    %c0_i32_1 = arith.constant 0 : i32
    return %c0_i32, %c0_i32_0 : i32, i32
  }
  func.func @transform_4(%arg0: i32) -> (i32, i32) {
    %c0_i32 = arith.constant 0 : i32
    %c0_i32_0 = arith.constant 0 : i32
    %c0_i32_1 = arith.constant 0 : i32
    return %c0_i32, %c0_i32_0 : i32, i32
  }
  func.func @transform_5(%arg0: i32) -> (i32, i32) {
    %c0_i32 = arith.constant 0 : i32
    %c0_i32_0 = arith.constant 0 : i32
    %c0_i32_1 = arith.constant 0 : i32
    return %c0_i32, %c0_i32_0 : i32, i32
  }
  func.func @transform_6(%arg0: i32) -> (i32, i32) {
    %c0_i32 = arith.constant 0 : i32
    %c0_i32_0 = arith.constant 0 : i32
    %c0_i32_1 = arith.constant 0 : i32
    return %c0_i32, %c0_i32_0 : i32, i32
  }
  func.func @transform_7(%arg0: i32) -> (i32, i32) {
    %c0_i32 = arith.constant 0 : i32
    %c0_i32_0 = arith.constant 0 : i32
    return %arg0, %c0_i32 : i32, i32
  }
}

</mosaic_0001>

<llo_original>
// kernel: tpu_custom_call.1
$region0: #{tpu_custom_call.1}
  #allocation0 [shape = 'u32[]', space=smem, size = 0x4, offset = 0x4, fixed_abs, tag = 'smem constant byte address 0x4 - core index']
  #allocation1 [shape = 'u32[144,128]{1,0:T(1,128)}', space=vmem, size = 0x12000, scoped, tag = 'internal scratch']
  %s0 = inlined_call_operand.vmem [shape: f32[8,64], index: 0, kind: input, shape index: {}]
  %s1 = inlined_call_operand.vmem [shape: f32[64,32], index: 1, kind: input, shape index: {}]
  %s2 = inlined_call_operand.vmem [shape: f32[1,32], index: 2, kind: input, shape index: {}]
  %s3 = inlined_call_operand.vmem [shape: f32[32,16], index: 3, kind: input, shape index: {}]
  %s4 = inlined_call_operand.vmem [shape: f32[1,16], index: 4, kind: input, shape index: {}]
  %s5 = inlined_call_operand.vmem [shape: f32[16,10], index: 5, kind: input, shape index: {}]
  %s6 = inlined_call_operand.vmem [shape: f32[1,10], index: 6, kind: input, shape index: {}]
  %s7 = inlined_call_operand.hbm [shape: f32[8,10], index: 7, kind: output, shape index: {}]
  %s8 = sld [smem:[#allocation0]]
  $region38: #{tpu_custom_call.1} parent=0
    _
  %s10 = ssub.s32 1, %s8
  %s11 = scalar_select 0, %s10, %s8
  $region1: #{tpu_custom_call.1} parent=0
    #allocation2 [shape = 'u8[4096]{0}', space=vmem, size = 0x1000, scoped, tag = 'output window, operand 0, single buffered']
    #allocation3 [shape = 's32[1]{0}', space=sflag, size = 0x4, scoped, tag = 'scoped memory for tpu_custom_call.1']
    %12 = vsyncpa [#allocation3], 0
    // Predicated region
    $region2: #{tpu_custom_call.1} parent=1 // pred_check
      _
    $region3: #{tpu_custom_call.1} parent=1 // pred_check_branch
      %14 = sbr.rel (0) target = $region5
    $region4: #{tpu_custom_call.1} parent=1 // pred_region
      _
    $region5: #{tpu_custom_call.1} parent=1 // pred_fallthru
      _
    // Predicated region
    $region6: #{tpu_custom_call.1} parent=1 // pred_check
      _
    $region7: #{tpu_custom_call.1} parent=1 // pred_check_branch
      %16 = sbr.rel (0) target = $region9
    $region8: #{tpu_custom_call.1} parent=1 // pred_region
      _
    $region9: #{tpu_custom_call.1} parent=1 // pred_fallthru
      _
    // Predicated region
    $region10: #{tpu_custom_call.1} parent=1 // pred_check
      _
    $region11: #{tpu_custom_call.1} parent=1 // pred_check_branch
      %18 = sbr.rel (0) target = $region13
    $region12: #{tpu_custom_call.1} parent=1 // pred_region
      _
    $region13: #{tpu_custom_call.1} parent=1 // pred_fallthru
      _
    // Predicated region
    $region14: #{tpu_custom_call.1} parent=1 // pred_check
      _
    $region15: #{tpu_custom_call.1} parent=1 // pred_check_branch
      %20 = sbr.rel (0) target = $region17
    $region16: #{tpu_custom_call.1} parent=1 // pred_region
      _
    $region17: #{tpu_custom_call.1} parent=1 // pred_fallthru
      _
    // Predicated region
    $region18: #{tpu_custom_call.1} parent=1 // pred_check
      _
    $region19: #{tpu_custom_call.1} parent=1 // pred_check_branch
      %22 = sbr.rel (0) target = $region21
    $region20: #{tpu_custom_call.1} parent=1 // pred_region
      _
    $region21: #{tpu_custom_call.1} parent=1 // pred_fallthru
      _
    // Predicated region
    $region22: #{tpu_custom_call.1} parent=1 // pred_check
      _
    $region23: #{tpu_custom_call.1} parent=1 // pred_check_branch
      %24 = sbr.rel (0) target = $region25
    $region24: #{tpu_custom_call.1} parent=1 // pred_region
      _
    $region25: #{tpu_custom_call.1} parent=1 // pred_fallthru
      _
    // Predicated region
    $region26: #{tpu_custom_call.1} parent=1 // pred_check
      _
    $region27: #{tpu_custom_call.1} parent=1 // pred_check_branch
      %26 = sbr.rel (0) target = $region29
    $region28: #{tpu_custom_call.1} parent=1 // pred_region
      _
    $region29: #{tpu_custom_call.1} parent=1 // pred_fallthru
      _
    %v27 = vld [vmem:[%s0] sm:$0xff]
    %v28 = vld [vmem:[%s1] sm:$0xff]
    %v29 = vld [vmem:[%s1 + $0x8] sm:$0xff]
    %v30 = vld [vmem:[%s1 + $0x10] sm:$0xff]
    %v31 = vld [vmem:[%s1 + $0x18] sm:$0xff]
    %v32 = vld [vmem:[%s1 + $0x20] sm:$0xff]
    %v33 = vld [vmem:[%s1 + $0x28] sm:$0xff]
    %v34 = vld [vmem:[%s1 + $0x30] sm:$0xff]
    %v35 = vld [vmem:[%s1 + $0x38] sm:$0xff]
    %v36 = vld [vmem:[%s2] sm:$0x1]
    %v38 = vlaneseq
    %v39 = vshrl.u32 %v38, 7
    %v40 = vsub.s32 0, %v39
    %v41 = vrot.slane %v36, %v40
    %vm43 = vcmask 523264
    %v45 = vsel %vm43, %v27, 0
    %47 = vmatprep.subr.mxu0 0.0
    %48 = vmatpush1.msra.mxu0 %v28
    %49 = vmatprep.subr.mxu0 0.0
    %50 = vmatpush1.msra.mxu0 %v29
    %51 = vmatprep.subr.mxu0 0.0
    %52 = vmatpush1.msra.mxu0 %v30
    %53 = vmatprep.subr.mxu0 0.0
    %54 = vmatpush1.msra.mxu0 %v31
    %55 = vmatprep.subr.mxu0 0.0
    %56 = vmatpush1.msra.mxu0 %v32
    %57 = vmatprep.subr.mxu0 0.0
    %58 = vmatpush1.msra.mxu0 %v33
    %59 = vmatprep.subr.mxu0 0.0
    %60 = vmatpush1.msra.mxu0 %v34
    %61 = vmatprep.subr.mxu0 0.0
    %62 = vmatpush1.msra.mxu0 %v35
    %63 = vmatprep.subr.mxu0 0.0
    %64 = vmatpush1.msra.mxu0 0.0
    %65 = vmatprep.subr.mxu0 0.0
    %66 = vmatpush1.msra.mxu0 0.0
    %67 = vmatprep.subr.mxu0 0.0
    %68 = vmatpush1.msra.mxu0 0.0
    %69 = vmatprep.subr.mxu0 0.0
    %70 = vmatpush1.msra.mxu0 0.0
    %71 = vmatprep.subr.mxu0 0.0
    %72 = vmatpush1.msra.mxu0 0.0
    %73 = vmatprep.subr.mxu0 0.0
    %74 = vmatpush1.msra.mxu0 0.0
    %75 = vmatprep.subr.mxu0 0.0
    %76 = vmatpush1.msra.mxu0 0.0
    %77 = vmatprep.subr.mxu0 0.0
    %78 = vmatpush1.msra.mxu0 0.0
    %79 = vmatprep.subr.mxu0 0.0
    %80 = vmatpush1.msra.mxu0 0.0
    %81 = vmatprep.subr.mxu0 0.0
    %82 = vmatpush1.msra.mxu0 0.0
    %83 = vmatprep.subr.mxu0 0.0
    %84 = vmatpush1.msra.mxu0 0.0
    %85 = vmatprep.subr.mxu0 0.0
    %86 = vmatpush1.msra.mxu0 0.0
    %87 = vmatprep.subr.mxu0 0.0
    %88 = vmatpush1.msra.mxu0 0.0
    %89 = vmatprep.subr.mxu0 0.0
    %90 = vmatpush1.msra.mxu0 0.0
    %91 = vmatprep.subr.mxu0 0.0
    %92 = vmatpush1.msra.mxu0 0.0
    %93 = vmatprep.subr.mxu0 0.0
    %94 = vmatpush1.msra.mxu0 0.0
    %95 = vmatprep.subr.mxu0 0.0
    %96 = vmatpush1.msra.mxu0 0.0
    %97 = vmatprep.subr.mxu0 0.0
    %98 = vmatpush1.msra.mxu0 0.0
    %99 = vmatprep.subr.mxu0 0.0
    %100 = vmatpush1.msra.mxu0 0.0
    %101 = vmatprep.subr.mxu0 0.0
    %102 = vmatpush1.msra.mxu0 0.0
    %103 = vmatprep.subr.mxu0 0.0
    %104 = vmatpush1.msra.mxu0 0.0
    %105 = vmatprep.subr.mxu0 0.0
    %106 = vmatpush1.msra.mxu0 0.0
    %107 = vmatprep.subr.mxu0 0.0
    %108 = vmatpush1.msra.mxu0 0.0
    %109 = vmatprep.subr.mxu0 0.0
    %110 = vmatpush1.msra.mxu0 0.0
    %111 = vmatprep.mubr.f32.mxu0 0.0
    %112 = vmatmul.mubr.f32.gmra.mrb[0].mxu0 %v45
    %v113 = vpop.f32.mrb[0].mxu0
    %v114 = vadd.f32 %v41, %v113
    %v115 = vpop.f32.mrb[0].mxu0
    %116 = vdwg.mxu0
    %v117 = vmax.f32 %v114, 0.0
    %v118 = vld [vmem:[%s3] sm:$0xff]
    %v119 = vld [vmem:[%s3 + $0x8] sm:$0xff]
    %v120 = vld [vmem:[%s3 + $0x10] sm:$0xff]
    %v121 = vld [vmem:[%s3 + $0x18] sm:$0xff]
    %v122 = vld [vmem:[%s4] sm:$0x1]
    %v124 = vlaneseq
    %v125 = vshrl.u32 %v124, 7
    %v126 = vsub.s32 0, %v125
    %v127 = vrot.slane %v122, %v126
    %vm129 = vcmask 261120
    %v131 = vsel %vm129, %v117, 0
    %133 = vmatprep.subr.mxu0 0.0
    %134 = vmatpush1.msra.mxu0 %v118
    %135 = vmatprep.subr.mxu0 0.0
    %136 = vmatpush1.msra.mxu0 %v119
    %137 = vmatprep.subr.mxu0 0.0
    %138 = vmatpush1.msra.mxu0 %v120
    %139 = vmatprep.subr.mxu0 0.0
    %140 = vmatpush1.msra.mxu0 %v121
    %141 = vmatprep.subr.mxu0 0.0
    %142 = vmatpush1.msra.mxu0 0.0
    %143 = vmatprep.subr.mxu0 0.0
    %144 = vmatpush1.msra.mxu0 0.0
    %145 = vmatprep.subr.mxu0 0.0
    %146 = vmatpush1.msra.mxu0 0.0
    %147 = vmatprep.subr.mxu0 0.0
    %148 = vmatpush1.msra.mxu0 0.0
    %149 = vmatprep.subr.mxu0 0.0
    %150 = vmatpush1.msra.mxu0 0.0
    %151 = vmatprep.subr.mxu0 0.0
    %152 = vmatpush1.msra.mxu0 0.0
    %153 = vmatprep.subr.mxu0 0.0
    %154 = vmatpush1.msra.mxu0 0.0
    %155 = vmatprep.subr.mxu0 0.0
    %156 = vmatpush1.msra.mxu0 0.0
    %157 = vmatprep.subr.mxu0 0.0
    %158 = vmatpush1.msra.mxu0 0.0
    %159 = vmatprep.subr.mxu0 0.0
    %160 = vmatpush1.msra.mxu0 0.0
    %161 = vmatprep.subr.mxu0 0.0
    %162 = vmatpush1.msra.mxu0 0.0
    %163 = vmatprep.subr.mxu0 0.0
    %164 = vmatpush1.msra.mxu0 0.0
    %165 = vmatprep.subr.mxu0 0.0
    %166 = vmatpush1.msra.mxu0 0.0
    %167 = vmatprep.subr.mxu0 0.0
    %168 = vmatpush1.msra.mxu0 0.0
    %169 = vmatprep.subr.mxu0 0.0
    %170 = vmatpush1.msra.mxu0 0.0
    %171 = vmatprep.subr.mxu0 0.0
    %172 = vmatpush1.msra.mxu0 0.0
    %173 = vmatprep.subr.mxu0 0.0
    %174 = vmatpush1.msra.mxu0 0.0
    %175 = vmatprep.subr.mxu0 0.0
    %176 = vmatpush1.msra.mxu0 0.0
    %177 = vmatprep.subr.mxu0 0.0
    %178 = vmatpush1.msra.mxu0 0.0
    %179 = vmatprep.subr.mxu0 0.0
    %180 = vmatpush1.msra.mxu0 0.0
    %181 = vmatprep.subr.mxu0 0.0
    %182 = vmatpush1.msra.mxu0 0.0
    %183 = vmatprep.subr.mxu0 0.0
    %184 = vmatpush1.msra.mxu0 0.0
    %185 = vmatprep.subr.mxu0 0.0
    %186 = vmatpush1.msra.mxu0 0.0
    %187 = vmatprep.subr.mxu0 0.0
    %188 = vmatpush1.msra.mxu0 0.0
    %189 = vmatprep.subr.mxu0 0.0
    %190 = vmatpush1.msra.mxu0 0.0
    %191 = vmatprep.subr.mxu0 0.0
    %192 = vmatpush1.msra.mxu0 0.0
    %193 = vmatprep.subr.mxu0 0.0
    %194 = vmatpush1.msra.mxu0 0.0
    %195 = vmatprep.subr.mxu0 0.0
    %196 = vmatpush1.msra.mxu0 0.0
    %197 = vmatprep.mubr.f32.mxu0 0.0
    %198 = vmatmul.mubr.f32.gmra.mrb[0].mxu0 %v131
    %v199 = vpop.f32.mrb[0].mxu0
    %v200 = vadd.f32 %v127, %v199
    %v201 = vpop.f32.mrb[0].mxu0
    %202 = vdwg.mxu0
    %v203 = vmax.f32 %v200, 0.0
    %v204 = vld [vmem:[%s5] sm:$0xff]
    %v205 = vld [vmem:[%s5 + $0x8] sm:$0xff]
    %v206 = vld [vmem:[%s6] sm:$0x1]
    %v208 = vlaneseq
    %v209 = vshrl.u32 %v208, 7
    %v210 = vsub.s32 0, %v209
    %v211 = vrot.slane %v206, %v210
    %vm213 = vcmask 130048
    %v215 = vsel %vm213, %v203, 0
    %217 = vmatprep.subr.mxu0 0.0
    %218 = vmatpush1.msra.mxu0 %v204
    %219 = vmatprep.subr.mxu0 0.0
    %220 = vmatpush1.msra.mxu0 %v205
    %221 = vmatprep.subr.mxu0 0.0
    %222 = vmatpush1.msra.mxu0 0.0
    %223 = vmatprep.subr.mxu0 0.0
    %224 = vmatpush1.msra.mxu0 0.0
    %225 = vmatprep.subr.mxu0 0.0
    %226 = vmatpush1.msra.mxu0 0.0
    %227 = vmatprep.subr.mxu0 0.0
    %228 = vmatpush1.msra.mxu0 0.0
    %229 = vmatprep.subr.mxu0 0.0
    %230 = vmatpush1.msra.mxu0 0.0
    %231 = vmatprep.subr.mxu0 0.0
    %232 = vmatpush1.msra.mxu0 0.0
    %233 = vmatprep.subr.mxu0 0.0
    %234 = vmatpush1.msra.mxu0 0.0
    %235 = vmatprep.subr.mxu0 0.0
    %236 = vmatpush1.msra.mxu0 0.0
    %237 = vmatprep.subr.mxu0 0.0
    %238 = vmatpush1.msra.mxu0 0.0
    %239 = vmatprep.subr.mxu0 0.0
    %240 = vmatpush1.msra.mxu0 0.0
    %241 = vmatprep.subr.mxu0 0.0
    %242 = vmatpush1.msra.mxu0 0.0
    %243 = vmatprep.subr.mxu0 0.0
    %244 = vmatpush1.msra.mxu0 0.0
    %245 = vmatprep.subr.mxu0 0.0
    %246 = vmatpush1.msra.mxu0 0.0
    %247 = vmatprep.subr.mxu0 0.0
    %248 = vmatpush1.msra.mxu0 0.0
    %249 = vmatprep.subr.mxu0 0.0
    %250 = vmatpush1.msra.mxu0 0.0
    %251 = vmatprep.subr.mxu0 0.0
    %252 = vmatpush1.msra.mxu0 0.0
    %253 = vmatprep.subr.mxu0 0.0
    %254 = vmatpush1.msra.mxu0 0.0
    %255 = vmatprep.subr.mxu0 0.0
    %256 = vmatpush1.msra.mxu0 0.0
    %257 = vmatprep.subr.mxu0 0.0
    %258 = vmatpush1.msra.mxu0 0.0
    %259 = vmatprep.subr.mxu0 0.0
    %260 = vmatpush1.msra.mxu0 0.0
    %261 = vmatprep.subr.mxu0 0.0
    %262 = vmatpush1.msra.mxu0 0.0
    %263 = vmatprep.subr.mxu0 0.0
    %264 = vmatpush1.msra.mxu0 0.0
    %265 = vmatprep.subr.mxu0 0.0
    %266 = vmatpush1.msra.mxu0 0.0
    %267 = vmatprep.subr.mxu0 0.0
    %268 = vmatpush1.msra.mxu0 0.0
    %269 = vmatprep.subr.mxu0 0.0
    %270 = vmatpush1.msra.mxu0 0.0
    %271 = vmatprep.subr.mxu0 0.0
    %272 = vmatpush1.msra.mxu0 0.0
    %273 = vmatprep.subr.mxu0 0.0
    %274 = vmatpush1.msra.mxu0 0.0
    %275 = vmatprep.subr.mxu0 0.0
    %276 = vmatpush1.msra.mxu0 0.0
    %277 = vmatprep.subr.mxu0 0.0
    %278 = vmatpush1.msra.mxu0 0.0
    %279 = vmatprep.subr.mxu0 0.0
    %280 = vmatpush1.msra.mxu0 0.0
    %281 = vmatprep.mubr.f32.mxu0 0.0
    %282 = vmatmul.mubr.f32.gmra.mrb[0].mxu0 %v215
    %v283 = vpop.f32.mrb[0].mxu0
    %v284 = vadd.f32 %v211, %v283
    %v285 = vpop.f32.mrb[0].mxu0
    %286 = vdwg.mxu0
    %vm287 = vcmask 80896
    %288 = vst.msk [vmem:[#allocation2] sm:$0xff] %vm287, %v284
    // Predicated region
    $region30: #{tpu_custom_call.1} parent=1 // pred_check
      _
    $region31: #{tpu_custom_call.1} parent=1 // pred_check_branch
      %290 = sbr.rel (0) target = $region33
    $region32: #{tpu_custom_call.1} parent=1 // pred_region
      %s292 = ssub.s32 128, 128
      %293 = vsyncadd [#allocation3], %s292
      %s295 = sshll.u32 [#allocation2], 4
      %s296 = int_to_ptr.vmem [resolvable:$true] %s295
      %298 = dma.vmem_to_hbm [thread:$0]  %s296, 128, %s7, [#allocation3]
    $region33: #{tpu_custom_call.1} parent=1 // pred_fallthru
      _
    // Predicated region
    $region34: #{tpu_custom_call.1} parent=1 // pred_check
      _
    $region35: #{tpu_custom_call.1} parent=1 // pred_check_branch
      %300 = sbr.rel (0) target = $region37
    $region36: #{tpu_custom_call.1} parent=1 // pred_region
      %301 = dma.done [#allocation3], 128
    $region37: #{tpu_custom_call.1} parent=1 // pred_fallthru
      _
    %302 = vsyncpa [#allocation3], 1

</llo_original>
